<compile_context>
chip_gen: v5e
topology: v5e:2x2
jax: 0.10.0
libtpu: 0.0.40
codegen_flags: <defaults>
</compile_context>

<pallas_src>
import functools

import jax
import jax.numpy as jnp
from jax.experimental import pallas as pl
from jax.experimental.pallas import tpu as pltpu


def _radial_pad_kernel(x_ref, o_ref, *, pad, H, W):
    """x_ref: (TB, H, W) block of planes; o_ref: (TB, H+2p, W+2p) block."""
    x = x_ref[...]                      # (TB, H, W)

    if pad == 0:
        o_ref[...] = x
        return

    p = pad
    Ho = H + 2 * p
    Wo = W + 2 * p
    TB = x.shape[0]

    def write_band(rows, r0, nrows):
        # rows: (TB, nrows, W) = the H-content of output rows [r0, r0+nrows).
        # Write the three W bands directly: [left wrap | interior | right wrap].
        o_ref[:, r0:r0 + nrows, p:p + W] = rows
        o_ref[:, r0:r0 + nrows, 0:p] = rows[:, :, W - p:W]       # circular left
        o_ref[:, r0:r0 + nrows, p + W:Wo] = rows[:, :, 0:p]      # circular right

    # Interior rows: just x (with circular W halos).
    write_band(x, p, H)

    # Replicate H halos: first/last row of x broadcast over `p` rows, then the
    # same circular W treatment (matches F.pad replicate-then-circular order).
    top = jnp.broadcast_to(x[:, 0:1, :], (TB, p, W))
    bot = jnp.broadcast_to(x[:, H - 1:H, :], (TB, p, W))
    write_band(top, 0, p)
    write_band(bot, p + H, p)


def radial_pad(x, padding, *, target_block_bytes=1 << 20):
    """Pallas implementation of RadialPad.forward for NCHW input."""
    B, C, H, W = x.shape
    p = int(padding)
    assert 0 <= p <= W, "circular padding requires padding <= W (PyTorch constraint)"
    Ho, Wo = H + 2 * p, W + 2 * p

    # Flatten (B, C) -> N so each grid step processes many planes (fat blocks).
    N = B * C
    xf = x.reshape(N, H, W)
    itemsize = jnp.dtype(x.dtype).itemsize

    # Choose the plane-block size TB:
    #   * ~target_block_bytes per output buffer (double-buffered in+out stays
    #     far below the 32 MiB scoped VMEM default and v7x's 64 MiB VMEM),
    #   * >= 2 grid steps when possible so v7x's two TensorCores share work,
    #   * a divisor of N so every block is full (no ragged trailing block).
    tb = max(1, target_block_bytes // (Ho * Wo * itemsize))
    tb = min(tb, N)
    if N >= 2:
        tb = min(tb, pl.cdiv(N, 2))
    while N % tb:
        tb -= 1
    grid = (N // tb,)

    kernel = functools.partial(_radial_pad_kernel, pad=p, H=H, W=W)
    bytes_accessed = (N * H * W + N * Ho * Wo) * itemsize

    out = pl.pallas_call(
        kernel,
        out_shape=jax.ShapeDtypeStruct((N, Ho, Wo), x.dtype),
        grid=grid,
        in_specs=[pl.BlockSpec((tb, H, W), lambda i: (i, 0, 0))],
        out_specs=pl.BlockSpec((tb, Ho, Wo), lambda i: (i, 0, 0)),
        compiler_params=pltpu.CompilerParams(
            dimension_semantics=("parallel",),
        ),
        cost_estimate=pl.CostEstimate(
            flops=0, transcendentals=0, bytes_accessed=bytes_accessed),
    )(xf)
    return out.reshape(B, C, Ho, Wo)


def radial_pad_reference(x, padding):
    """Pure-JAX reference mirroring F.pad replicate (H) then circular (W)."""
    p = padding
    x1 = jnp.pad(x, ((0, 0), (0, 0), (p, p), (0, 0)), mode="edge")
    x2 = jnp.pad(x1, ((0, 0), (0, 0), (0, 0), (p, p)), mode="wrap")
    return x2


if __name__ == "__main__":
    # RadialPad has no learnable parameters; only the `padding` hyperparameter.
    padding = 2
    B, C, H, W = 2, 4, 16, 16

    key = jax.random.PRNGKey(0)
    x = jax.random.normal(key, (B, C, H, W), dtype=jnp.float32)

    out = jax.block_until_ready(radial_pad(x, padding))
    ref = radial_pad_reference(x, padding)

    assert out.shape == (B, C, H + 2 * padding, W + 2 * padding), out.shape
    assert out.dtype == x.dtype
    assert jnp.allclose(out, ref), "Pallas RadialPad mismatch vs reference"

    print("KERNEL_OK")
</pallas_src>

<mosaic_0001>
module attributes {stable_mosaic.version = 11 : i64} {
  func.func @_radial_pad_kernel(%arg0: i32, %arg1: memref<4x16x16xf32, #tpu.memory_space<vmem>>, %arg2: memref<4x20x20xf32, #tpu.memory_space<vmem>>) attributes {dimension_semantics = [#tpu.dimension_semantics<parallel>], iteration_bounds = array<i64: 2>, scalar_prefetch = 0 : i64, scratch_operands = 0 : i64, tpu.core_type = #tpu.core_type<tc>, window_params = [{transform_indices = @transform_0, window_bounds = array<i64: 4, 16, 16>}, {transform_indices = @transform_1, window_bounds = array<i64: 4, 20, 20>}]} {
    %c0 = arith.constant 0 : index
    %c0_0 = arith.constant 0 : index
    %c0_1 = arith.constant 0 : index
    %0 = vector.load %arg1[%c0, %c0_0, %c0_1] : memref<4x16x16xf32, #tpu.memory_space<vmem>>, vector<4x16x16xf32>
    %c0_2 = arith.constant 0 : index
    %c2 = arith.constant 2 : index
    %c2_3 = arith.constant 2 : index
    %1 = vector.load %arg2[%c0_2, %c2, %c2_3] : memref<4x20x20xf32, #tpu.memory_space<vmem>>, vector<4x16x16xf32>
    tpu.vector_store %arg2[%c0_2, %c2, %c2_3], %0 {strides = array<i32>} : memref<4x20x20xf32, #tpu.memory_space<vmem>>, vector<4x16x16xf32>,
    %2 = vector.extract_strided_slice %0 {offsets = [0, 0, 14], sizes = [4, 16, 2], strides = [1, 1, 1]} : vector<4x16x16xf32> to vector<4x16x2xf32>
    %c0_4 = arith.constant 0 : index
    %c2_5 = arith.constant 2 : index
    %c0_6 = arith.constant 0 : index
    %3 = vector.load %arg2[%c0_4, %c2_5, %c0_6] : memref<4x20x20xf32, #tpu.memory_space<vmem>>, vector<4x16x2xf32>
    tpu.vector_store %arg2[%c0_4, %c2_5, %c0_6], %2 {strides = array<i32>} : memref<4x20x20xf32, #tpu.memory_space<vmem>>, vector<4x16x2xf32>,
    %4 = vector.extract_strided_slice %0 {offsets = [0, 0, 0], sizes = [4, 16, 2], strides = [1, 1, 1]} : vector<4x16x16xf32> to vector<4x16x2xf32>
    %c0_7 = arith.constant 0 : index
    %c2_8 = arith.constant 2 : index
    %c18 = arith.constant 18 : index
    %5 = vector.load %arg2[%c0_7, %c2_8, %c18] : memref<4x20x20xf32, #tpu.memory_space<vmem>>, vector<4x16x2xf32>
    tpu.vector_store %arg2[%c0_7, %c2_8, %c18], %4 {strides = array<i32>} : memref<4x20x20xf32, #tpu.memory_space<vmem>>, vector<4x16x2xf32>,
    %6 = vector.extract_strided_slice %0 {offsets = [0, 0, 0], sizes = [4, 1, 16], strides = [1, 1, 1]} : vector<4x16x16xf32> to vector<4x1x16xf32>
    %7 = vector.shape_cast %6 : vector<4x1x16xf32> to vector<4x1x16xf32>
    %8 = vector.broadcast %7 : vector<4x1x16xf32> to vector<4x2x16xf32>
    %9 = vector.extract_strided_slice %0 {offsets = [0, 15, 0], sizes = [4, 1, 16], strides = [1, 1, 1]} : vector<4x16x16xf32> to vector<4x1x16xf32>
    %10 = vector.shape_cast %9 : vector<4x1x16xf32> to vector<4x1x16xf32>
    %11 = vector.broadcast %10 : vector<4x1x16xf32> to vector<4x2x16xf32>
    %c0_9 = arith.constant 0 : index
    %c0_10 = arith.constant 0 : index
    %c2_11 = arith.constant 2 : index
    %12 = vector.load %arg2[%c0_9, %c0_10, %c2_11] : memref<4x20x20xf32, #tpu.memory_space<vmem>>, vector<4x2x16xf32>
    tpu.vector_store %arg2[%c0_9, %c0_10, %c2_11], %8 {strides = array<i32>} : memref<4x20x20xf32, #tpu.memory_space<vmem>>, vector<4x2x16xf32>,
    %13 = vector.extract_strided_slice %8 {offsets = [0, 0, 14], sizes = [4, 2, 2], strides = [1, 1, 1]} : vector<4x2x16xf32> to vector<4x2x2xf32>
    %c0_12 = arith.constant 0 : index
    %c0_13 = arith.constant 0 : index
    %c0_14 = arith.constant 0 : index
    %14 = vector.load %arg2[%c0_12, %c0_13, %c0_14] : memref<4x20x20xf32, #tpu.memory_space<vmem>>, vector<4x2x2xf32>
    tpu.vector_store %arg2[%c0_12, %c0_13, %c0_14], %13 {strides = array<i32>} : memref<4x20x20xf32, #tpu.memory_space<vmem>>, vector<4x2x2xf32>,
    %15 = vector.extract_strided_slice %8 {offsets = [0, 0, 0], sizes = [4, 2, 2], strides = [1, 1, 1]} : vector<4x2x16xf32> to vector<4x2x2xf32>
    %c0_15 = arith.constant 0 : index
    %c0_16 = arith.constant 0 : index
    %c18_17 = arith.constant 18 : index
    %16 = vector.load %arg2[%c0_15, %c0_16, %c18_17] : memref<4x20x20xf32, #tpu.memory_space<vmem>>, vector<4x2x2xf32>
    tpu.vector_store %arg2[%c0_15, %c0_16, %c18_17], %15 {strides = array<i32>} : memref<4x20x20xf32, #tpu.memory_space<vmem>>, vector<4x2x2xf32>,
    %c0_18 = arith.constant 0 : index
    %c18_19 = arith.constant 18 : index
    %c2_20 = arith.constant 2 : index
    %17 = vector.load %arg2[%c0_18, %c18_19, %c2_20] : memref<4x20x20xf32, #tpu.memory_space<vmem>>, vector<4x2x16xf32>
    tpu.vector_store %arg2[%c0_18, %c18_19, %c2_20], %11 {strides = array<i32>} : memref<4x20x20xf32, #tpu.memory_space<vmem>>, vector<4x2x16xf32>,
    %18 = vector.extract_strided_slice %11 {offsets = [0, 0, 14], sizes = [4, 2, 2], strides = [1, 1, 1]} : vector<4x2x16xf32> to vector<4x2x2xf32>
    %c0_21 = arith.constant 0 : index
    %c18_22 = arith.constant 18 : index
    %c0_23 = arith.constant 0 : index
    %19 = vector.load %arg2[%c0_21, %c18_22, %c0_23] : memref<4x20x20xf32, #tpu.memory_space<vmem>>, vector<4x2x2xf32>
    tpu.vector_store %arg2[%c0_21, %c18_22, %c0_23], %18 {strides = array<i32>} : memref<4x20x20xf32, #tpu.memory_space<vmem>>, vector<4x2x2xf32>,
    %20 = vector.extract_strided_slice %11 {offsets = [0, 0, 0], sizes = [4, 2, 2], strides = [1, 1, 1]} : vector<4x2x16xf32> to vector<4x2x2xf32>
    %c0_24 = arith.constant 0 : index
    %c18_25 = arith.constant 18 : index
    %c18_26 = arith.constant 18 : index
    %21 = vector.load %arg2[%c0_24, %c18_25, %c18_26] : memref<4x20x20xf32, #tpu.memory_space<vmem>>, vector<4x2x2xf32>
    tpu.vector_store %arg2[%c0_24, %c18_25, %c18_26], %20 {strides = array<i32>} : memref<4x20x20xf32, #tpu.memory_space<vmem>>, vector<4x2x2xf32>,
    return
  }
  func.func @transform_0(%arg0: i32) -> (i32, i32, i32) {
    %c0_i32 = arith.constant 0 : i32
    %c0_i32_0 = arith.constant 0 : i32
    %c0_i32_1 = arith.constant 0 : i32
    return %arg0, %c0_i32, %c0_i32_0 : i32, i32, i32
  }
  func.func @transform_1(%arg0: i32) -> (i32, i32, i32) {
    %c0_i32 = arith.constant 0 : i32
    %c0_i32_0 = arith.constant 0 : i32
    %c0_i32_1 = arith.constant 0 : i32
    return %arg0, %c0_i32, %c0_i32_0 : i32, i32, i32
  }
}

</mosaic_0001>

<llo_original>
// kernel: tpu_custom_call.1
$region0: #{tpu_custom_call.1}
  #allocation0 [shape = 'u32[]', space=smem, size = 0x4, offset = 0x4, fixed_abs, tag = 'smem constant byte address 0x4 - core index']
  #allocation1 [shape = 'u32[72,128]{1,0:T(1,128)}', space=vmem, size = 0x9000, scoped, tag = 'internal scratch']
  %s0 = inlined_call_operand.hbm [shape: f32[8,16,16], index: 0, kind: input, shape index: {}]
  %s1 = inlined_call_operand.vmem [shape: f32[8,20,20], index: 1, kind: output, shape index: {}]
  %s2 = sld [smem:[#allocation0]]
  $region41: #{tpu_custom_call.1} parent=0
    _
  %s4 = ssub.s32 1, %s2
  %s5 = scalar_select 0, %s4, %s2
  $region1: #{tpu_custom_call.1} parent=0
    #allocation2 [shape = 'u8[65536]{0}', space=vmem, size = 0x10000, scoped, tag = 'input window, operand 0']
    #allocation3 [shape = 's32[2]{0}', space=sflag, size = 0x8, scoped, tag = 'scoped memory for tpu_custom_call.1']
    %6 = vsyncpa [#allocation3], 0
    %s7 = scalar_lea.sflag [#allocation3], 1
    %8 = vsyncpa %s7, 0
    loop: start=0, step=1, limit=4
    $region2: #{tpu_custom_call.1} parent=1 // loop_pre_header
      _
    $region3: #{tpu_custom_call.1} parent=1 // loop_header
      %s10 = sphi 0, %s14
      %p11 = scmp.ge.s32.totalorder %s10, 4
      %s20 = sphi 0, %s22
      %s23 = sphi 0, %s20
      %s24 = sphi 0, %s23
      %s40 = sphi 0, %s24
      %s46 = sphi 0, %s48
      %s49 = sphi 0, %s46
      %s50 = sphi 0, %s49
      %s66 = sphi 0, %s50
    $region4: #{tpu_custom_call.1} parent=1 // loop_header_branch
      %13 = sbr.rel (%p11) target = $region8
    $region5: #{tpu_custom_call.1} parent=1 // loop_body
      %s15 = ssub.s32 %s10, 1
      %s16 = ssub.s32 %s10, 2
      %s17 = sadd.s32 %s10, 1
      %s18 = ssub.s32 %s10, %s17
      %p19 = scmp.eq.s32.totalorder %s18, 0
      %s21 = sadd.s32 %s20, 1
      %s22 = scalar_select %p19, %s20, %s21
      %p25 = pneg %p19
      %p26 = scmp.eq.s32.totalorder %s10, 1
      %p27 = por %p25, %p26
      %p28 = scmp.ne.s32.totalorder %s20, %s23
      %p29 = scmp.eq.s32.totalorder %s10, 0
      %p30 = por %p28, %p29
      %p31 = scmp.ne.s32.totalorder %s20, %s23
      %p32 = scmp.eq.s32.totalorder %s15, 1
      %p33 = por %p31, %p32
      %p34 = scmp.ne.s32.totalorder %s23, %s24
      %p35 = scmp.eq.s32.totalorder %s15, 0
      %p36 = por %p34, %p35
      %p37 = scmp.ne.s32.totalorder %s23, %s24
      %p38 = scmp.eq.s32.totalorder %s16, 1
      %p39 = por %p37, %p38
      %p41 = scmp.ne.s32.totalorder %s24, %s40
      %p42 = scmp.eq.s32.totalorder %s16, 0
      %p43 = por %p41, %p42
      %s44 = ssub.s32 %s10, %s17
      %p45 = scmp.eq.s32.totalorder %s44, 0
      %s47 = sadd.s32 %s46, 1
      %s48 = scalar_select %p45, %s46, %s47
      %p51 = pneg %p45
      %p52 = scmp.eq.s32.totalorder %s10, 1
      %p53 = por %p51, %p52
      %p54 = scmp.ne.s32.totalorder %s46, %s49
      %p55 = scmp.eq.s32.totalorder %s10, 0
      %p56 = por %p54, %p55
      %p57 = scmp.ne.s32.totalorder %s46, %s49
      %p58 = scmp.eq.s32.totalorder %s15, 1
      %p59 = por %p57, %p58
      %p60 = scmp.ne.s32.totalorder %s49, %s50
      %p61 = scmp.eq.s32.totalorder %s15, 0
      %p62 = por %p60, %p61
      %p63 = scmp.ne.s32.totalorder %s49, %s50
      %p64 = scmp.eq.s32.totalorder %s16, 1
      %p65 = por %p63, %p64
      %p67 = scmp.ne.s32.totalorder %s50, %s66
      %p68 = scmp.eq.s32.totalorder %s16, 0
      %p69 = por %p67, %p68
      %p70 = scmp.le.s32.totalorder 1, %s10
      %p71 = scmp.lt.s32.totalorder %s10, 3
      %p72 = pnand %p70, %p71
      %p73 = pneg %p72
      // Predicated region
      $region9: #{tpu_custom_call.1} parent=5 // pred_check
        _
      $region10: #{tpu_custom_call.1} parent=5 // pred_check_branch
        %75 = sbr.rel (%p72) target = $region12
      $region11: #{tpu_custom_call.1} parent=5 // pred_region
        %s76 = ssub.s32 %s10, 1
      $region12: #{tpu_custom_call.1} parent=5 // pred_fallthru
        _
      %p77 = scmp.lt.s32.totalorder %s10, 2
      // Predicated region
      $region13: #{tpu_custom_call.1} parent=5 // pred_check
        %p78 = pneg %p77
      $region14: #{tpu_custom_call.1} parent=5 // pred_check_branch
        %80 = sbr.rel (%p78) target = $region16
      $region15: #{tpu_custom_call.1} parent=5 // pred_region
        // Predicated region
        $region17: #{tpu_custom_call.1} parent=15 // pred_check
          %p81 = pneg %p30
        $region18: #{tpu_custom_call.1} parent=15 // pred_check_branch
          %83 = sbr.rel (%p81) target = $region20
        $region19: #{tpu_custom_call.1} parent=15 // pred_region
          %s84 = sand.u32 %s20, 1
          %s85 = scalar_lea.sflag [#allocation3], %s84
          %s86 = sand.u32 %s20, 1
          %s87 = smul.addr %s86, 64
          %s88 = scalar_lea.vmem [#allocation2], %s87
          %s89 = smul.u32 4, %s10
          %91 = vsyncadd %s85, 0
          %s92 = smul.addr %s89, 2
          %s93 = smul.addr %s92, 8
          %s94 = scalar_lea.hbm %s0, %s93
          %s95 = sshll.u32 %s94, 4
          %s96 = int_to_ptr.hbm [resolvable:$true] %s95
          %s97 = sshll.u32 %s88, 4
          %s98 = int_to_ptr.vmem [resolvable:$true] %s97
          %103 = dma.hbm_to_vmem [thread:$0]  %s96, 1024, %s98, %s85, 128, 128, 8
        $region20: #{tpu_custom_call.1} parent=15 // pred_fallthru
          _
      $region16: #{tpu_custom_call.1} parent=5 // pred_fallthru
        _
      %p104 = scmp.le.s32.totalorder 1, %s10
      %p105 = scmp.lt.s32.totalorder %s10, 3
      %p106 = pnand %p104, %p105
      %p107 = pneg %p106
      // Predicated region
      $region21: #{tpu_custom_call.1} parent=5 // pred_check
        _
      $region22: #{tpu_custom_call.1} parent=5 // pred_check_branch
        %109 = sbr.rel (%p106) target = $region24
      $region23: #{tpu_custom_call.1} parent=5 // pred_region
        %s110 = ssub.s32 %s10, 1
        %s111 = sand.u32 %s23, 1
        %s112 = scalar_lea.sflag [#allocation3], %s111
        %s113 = sand.u32 %s23, 1
        %s114 = smul.addr %s113, 64
        %s115 = scalar_lea.vmem [#allocation2], %s114
        // Predicated region
        $region25: #{tpu_custom_call.1} parent=23 // pred_check
          %p116 = pneg %p36
        $region26: #{tpu_custom_call.1} parent=23 // pred_check_branch
          %118 = sbr.rel (%p116) target = $region28
        $region27: #{tpu_custom_call.1} parent=23 // pred_region
          %120 = dma.done %s112, 1024
        $region28: #{tpu_custom_call.1} parent=23 // pred_fallthru
          _
        %s121 = sand.u32 %s23, 1
        %s122 = scalar_lea.sflag [#allocation3], %s121
        %s123 = sand.u32 %s23, 1
        %s124 = smul.addr %s123, 64
        %s125 = scalar_lea.vmem [#allocation2], %s124
        %p126 = pneg %p36
        %p127 = pneg %p33
        %p128 = pneg %p62
        %p129 = pneg %p59
        %s130 = smul.u32 4, %s15
        %p131 = scmp.lt.s32.totalorder %s130, 7
        %s132 = scalar_select %p131, %s130, 7
        %s133 = smul.addr %s132, 3
        %s134 = smul.addr %s133, 8
        %s135 = scalar_lea.vmem %s1, %s134
        %s136 = smul.u32 4, %s15
        %s137 = smul.u32 4, %s15
        %p138 = scmp.lt.s32.totalorder %s137, 7
        %s139 = scalar_select %p138, %s137, 7
        %s140 = smul.addr %s139, 3
        %s141 = smul.addr %s140, 8
        %s142 = scalar_lea.vmem %s1, %s141
        %s143 = smul.u32 4, %s15
        %v144 = vld [vmem:[%s115] sm:$0xff]
        %v145 = vld [vmem:[%s115 + $0x8] sm:$0xff]
        %v146 = vld [vmem:[%s115 + $0x10] sm:$0xff]
        %v147 = vld [vmem:[%s115 + $0x18] sm:$0xff]
        %v148 = vld [vmem:[%s115 + $0x20] sm:$0xff]
        %v149 = vld [vmem:[%s115 + $0x28] sm:$0xff]
        %v150 = vld [vmem:[%s115 + $0x30] sm:$0xff]
        %v151 = vld [vmem:[%s115 + $0x38] sm:$0xff]
        %160 = vrot.lane.b32.xlu0 %v144, 2
        %v161 = vpop.permute.xlu0 %160
        %162 = vrot.lane.b32.xlu0 %v145, 2
        %v163 = vpop.permute.xlu0 %162
        %164 = vrot.lane.b32.xlu0 %v146, 2
        %v165 = vpop.permute.xlu0 %164
        %166 = vrot.lane.b32.xlu0 %v147, 2
        %v167 = vpop.permute.xlu0 %166
        %168 = vrot.lane.b32.xlu0 %v148, 2
        %v169 = vpop.permute.xlu0 %168
        %170 = vrot.lane.b32.xlu0 %v149, 2
        %v171 = vpop.permute.xlu0 %170
        %172 = vrot.lane.b32.xlu0 %v150, 2
        %v173 = vpop.permute.xlu0 %172
        %174 = vrot.lane.b32.xlu0 %v151, 2
        %v175 = vpop.permute.xlu0 %174
        %vm184 = vcmask 146448
        %185 = vst.msk [vmem:[%s142 + $0x2] sm:$0xff] %vm184, %v161
        %186 = vst.msk [vmem:[%s142 + $0xa] sm:$0xff] %vm184, %v163
        %187 = vst.msk [vmem:[%s142 + $0x1a] sm:$0xff] %vm184, %v165
        %188 = vst.msk [vmem:[%s142 + $0x22] sm:$0xff] %vm184, %v167
        %189 = vst.msk [vmem:[%s142 + $0x32] sm:$0xff] %vm184, %v169
        %190 = vst.msk [vmem:[%s142 + $0x3a] sm:$0xff] %vm184, %v171
        %191 = vst.msk [vmem:[%s142 + $0x4a] sm:$0xff] %vm184, %v173
        %192 = vst.msk [vmem:[%s142 + $0x52] sm:$0xff] %vm184, %v175
        %193 = vrot.lane.b32.xlu0 %v144, 114
        %v194 = vpop.permute.xlu0 %193
        %195 = vrot.lane.b32.xlu0 %v145, 114
        %v196 = vpop.permute.xlu0 %195
        %197 = vrot.lane.b32.xlu0 %v146, 114
        %v198 = vpop.permute.xlu0 %197
        %199 = vrot.lane.b32.xlu0 %v147, 114
        %v200 = vpop.permute.xlu0 %199
        %201 = vrot.lane.b32.xlu0 %v148, 114
        %v202 = vpop.permute.xlu0 %201
        %203 = vrot.lane.b32.xlu0 %v149, 114
        %v204 = vpop.permute.xlu0 %203
        %205 = vrot.lane.b32.xlu0 %v150, 114
        %v206 = vpop.permute.xlu0 %205
        %207 = vrot.lane.b32.xlu0 %v151, 114
        %v208 = vpop.permute.xlu0 %207
        %vm217 = vcmask 15360
        %218 = vst.msk [vmem:[%s142 + $0x2] sm:$0xff] %vm217, %v194
        %219 = vst.msk [vmem:[%s142 + $0xa] sm:$0xff] %vm217, %v196
        %220 = vst.msk [vmem:[%s142 + $0x1a] sm:$0xff] %vm217, %v198
        %221 = vst.msk [vmem:[%s142 + $0x22] sm:$0xff] %vm217, %v200
        %222 = vst.msk [vmem:[%s142 + $0x32] sm:$0xff] %vm217, %v202
        %223 = vst.msk [vmem:[%s142 + $0x3a] sm:$0xff] %vm217, %v204
        %224 = vst.msk [vmem:[%s142 + $0x4a] sm:$0xff] %vm217, %v206
        %225 = vst.msk [vmem:[%s142 + $0x52] sm:$0xff] %vm217, %v208
        %226 = vrot.lane.b32.xlu0 %v144, 18
        %v227 = vpop.permute.xlu0 %226
        %228 = vrot.lane.b32.xlu0 %v145, 18
        %v229 = vpop.permute.xlu0 %228
        %230 = vrot.lane.b32.xlu0 %v146, 18
        %v231 = vpop.permute.xlu0 %230
        %232 = vrot.lane.b32.xlu0 %v147, 18
        %v233 = vpop.permute.xlu0 %232
        %234 = vrot.lane.b32.xlu0 %v148, 18
        %v235 = vpop.permute.xlu0 %234
        %236 = vrot.lane.b32.xlu0 %v149, 18
        %v237 = vpop.permute.xlu0 %236
        %238 = vrot.lane.b32.xlu0 %v150, 18
        %v239 = vpop.permute.xlu0 %238
        %240 = vrot.lane.b32.xlu0 %v151, 18
        %v241 = vpop.permute.xlu0 %240
        %vm250 = vcmask 162960
        %251 = vst.msk [vmem:[%s142 + $0x2] sm:$0xff] %vm250, %v227
        %252 = vst.msk [vmem:[%s142 + $0xa] sm:$0xff] %vm250, %v229
        %253 = vst.msk [vmem:[%s142 + $0x1a] sm:$0xff] %vm250, %v231
        %254 = vst.msk [vmem:[%s142 + $0x22] sm:$0xff] %vm250, %v233
        %255 = vst.msk [vmem:[%s142 + $0x32] sm:$0xff] %vm250, %v235
        %256 = vst.msk [vmem:[%s142 + $0x3a] sm:$0xff] %vm250, %v237
        %257 = vst.msk [vmem:[%s142 + $0x4a] sm:$0xff] %vm250, %v239
        %258 = vst.msk [vmem:[%s142 + $0x52] sm:$0xff] %vm250, %v241
        %v259 = vperm.slane %v144, 0
        %v260 = vperm.slane %v146, 0
        %v261 = vperm.slane %v148, 0
        %v262 = vperm.slane %v150, 0
        %v263 = vperm.slane %v145, 7
        %v264 = vperm.slane %v147, 7
        %v265 = vperm.slane %v149, 7
        %v266 = vperm.slane %v151, 7
        %271 = vrot.lane.b32.xlu0 %v259, 2
        %v272 = vpop.permute.xlu0 %271
        %273 = vrot.lane.b32.xlu0 %v260, 2
        %v274 = vpop.permute.xlu0 %273
        %275 = vrot.lane.b32.xlu0 %v261, 2
        %v276 = vpop.permute.xlu0 %275
        %277 = vrot.lane.b32.xlu0 %v262, 2
        %v278 = vpop.permute.xlu0 %277
        %vm283 = vcmask 140304
        %284 = vst.msk [vmem:[%s142] sm:$0x3] %vm283, %v272
        %285 = vst.msk [vmem:[%s142 + $0x18] sm:$0x3] %vm283, %v274
        %286 = vst.msk [vmem:[%s142 + $0x30] sm:$0x3] %vm283, %v276
        %287 = vst.msk [vmem:[%s142 + $0x48] sm:$0x3] %vm283, %v278
        %288 = vrot.lane.b32.xlu0 %v259, 114
        %v289 = vpop.permute.xlu0 %288
        %290 = vrot.lane.b32.xlu0 %v260, 114
        %v291 = vpop.permute.xlu0 %290
        %292 = vrot.lane.b32.xlu0 %v261, 114
        %v293 = vpop.permute.xlu0 %292
        %294 = vrot.lane.b32.xlu0 %v262, 114
        %v295 = vpop.permute.xlu0 %294
        %vm300 = vcmask 9216
        %301 = vst.msk [vmem:[%s142] sm:$0x3] %vm300, %v289
        %302 = vst.msk [vmem:[%s142 + $0x18] sm:$0x3] %vm300, %v291
        %303 = vst.msk [vmem:[%s142 + $0x30] sm:$0x3] %vm300, %v293
        %304 = vst.msk [vmem:[%s142 + $0x48] sm:$0x3] %vm300, %v295
        %305 = vrot.lane.b32.xlu0 %v259, 18
        %v306 = vpop.permute.xlu0 %305
        %307 = vrot.lane.b32.xlu0 %v260, 18
        %v308 = vpop.permute.xlu0 %307
        %309 = vrot.lane.b32.xlu0 %v261, 18
        %v310 = vpop.permute.xlu0 %309
        %311 = vrot.lane.b32.xlu0 %v262, 18
        %v312 = vpop.permute.xlu0 %311
        %vm317 = vcmask 156816
        %318 = vst.msk [vmem:[%s142] sm:$0x3] %vm317, %v306
        %319 = vst.msk [vmem:[%s142 + $0x18] sm:$0x3] %vm317, %v308
        %320 = vst.msk [vmem:[%s142 + $0x30] sm:$0x3] %vm317, %v310
        %321 = vst.msk [vmem:[%s142 + $0x48] sm:$0x3] %vm317, %v312
        %326 = vrot.lane.b32.xlu0 %v263, 2
        %v327 = vpop.permute.xlu0 %326
        %328 = vrot.lane.b32.xlu0 %v264, 2
        %v329 = vpop.permute.xlu0 %328
        %330 = vrot.lane.b32.xlu0 %v265, 2
        %v331 = vpop.permute.xlu0 %330
        %332 = vrot.lane.b32.xlu0 %v266, 2
        %v333 = vpop.permute.xlu0 %332
        %338 = vst.msk [vmem:[%s142 + $0x12] sm:$0x3] %vm283, %v327
        %339 = vst.msk [vmem:[%s142 + $0x2a] sm:$0x3] %vm283, %v329
        %340 = vst.msk [vmem:[%s142 + $0x42] sm:$0x3] %vm283, %v331
        %341 = vst.msk [vmem:[%s142 + $0x5a] sm:$0x3] %vm283, %v333
        %342 = vrot.lane.b32.xlu0 %v263, 114
        %v343 = vpop.permute.xlu0 %342
        %344 = vrot.lane.b32.xlu0 %v264, 114
        %v345 = vpop.permute.xlu0 %344
        %346 = vrot.lane.b32.xlu0 %v265, 114
        %v347 = vpop.permute.xlu0 %346
        %348 = vrot.lane.b32.xlu0 %v266, 114
        %v349 = vpop.permute.xlu0 %348
        %354 = vst.msk [vmem:[%s142 + $0x12] sm:$0x3] %vm300, %v343
        %355 = vst.msk [vmem:[%s142 + $0x2a] sm:$0x3] %vm300, %v345
        %356 = vst.msk [vmem:[%s142 + $0x42] sm:$0x3] %vm300, %v347
        %357 = vst.msk [vmem:[%s142 + $0x5a] sm:$0x3] %vm300, %v349
        %358 = vrot.lane.b32.xlu0 %v263, 18
        %v359 = vpop.permute.xlu0 %358
        %360 = vrot.lane.b32.xlu0 %v264, 18
        %v361 = vpop.permute.xlu0 %360
        %362 = vrot.lane.b32.xlu0 %v265, 18
        %v363 = vpop.permute.xlu0 %362
        %364 = vrot.lane.b32.xlu0 %v266, 18
        %v365 = vpop.permute.xlu0 %364
        %370 = vst.msk [vmem:[%s142 + $0x12] sm:$0x3] %vm317, %v359
        %371 = vst.msk [vmem:[%s142 + $0x2a] sm:$0x3] %vm317, %v361
        %372 = vst.msk [vmem:[%s142 + $0x42] sm:$0x3] %vm317, %v363
        %373 = vst.msk [vmem:[%s142 + $0x5a] sm:$0x3] %vm317, %v365
        %s374 = smul.u32 4, %s15
        %p375 = scmp.lt.s32.totalorder %s374, 7
        %s376 = scalar_select %p375, %s374, 7
        %s377 = smul.addr %s376, 3
        %s378 = smul.addr %s377, 8
        %s379 = scalar_lea.vmem %s1, %s378
        // Predicated region
        $region29: #{tpu_custom_call.1} parent=23 // pred_check
          %p380 = pneg %p59
        $region30: #{tpu_custom_call.1} parent=23 // pred_check_branch
          %382 = sbr.rel (%p380) target = $region32
        $region31: #{tpu_custom_call.1} parent=23 // pred_region
          %s383 = smul.u32 4, %s15
        $region32: #{tpu_custom_call.1} parent=23 // pred_fallthru
          _
      $region24: #{tpu_custom_call.1} parent=5 // pred_fallthru
        _
      %p384 = scmp.le.s32.totalorder 2, %s10
      // Predicated region
      $region33: #{tpu_custom_call.1} parent=5 // pred_check
        %p385 = pneg %p384
      $region34: #{tpu_custom_call.1} parent=5 // pred_check_branch
        %387 = sbr.rel (%p385) target = $region36
      $region35: #{tpu_custom_call.1} parent=5 // pred_region
        %s388 = ssub.s32 %s10, 2
        // Predicated region
        $region37: #{tpu_custom_call.1} parent=35 // pred_check
          %p389 = pneg %p65
        $region38: #{tpu_custom_call.1} parent=35 // pred_check_branch
          %391 = sbr.rel (%p389) target = $region40
        $region39: #{tpu_custom_call.1} parent=35 // pred_region
          %s392 = smul.u32 4, %s16
          %p393 = scmp.lt.s32.totalorder %s392, 7
          %s394 = scalar_select %p393, %s392, 7
          %s395 = smul.addr %s394, 3
          %s396 = smul.addr %s395, 8
          %s397 = scalar_lea.vmem %s1, %s396
        $region40: #{tpu_custom_call.1} parent=35 // pred_fallthru
          _
      $region36: #{tpu_custom_call.1} parent=5 // pred_fallthru
        _
    $region6: #{tpu_custom_call.1} parent=1 // loop_footer
      %s14 = sadd.s32 1, %s10
    $region7: #{tpu_custom_call.1} parent=1 // loop_footer_branch
      %9 = sbr.rel target = $region3
    $region8: #{tpu_custom_call.1} parent=1 // loop_exit
      _
    %398 = vsyncpa [#allocation3], 1
    %s399 = scalar_lea.sflag [#allocation3], 1
    %400 = vsyncpa %s399, 1

</llo_original>
